<compile_context>
chip_gen: v7x
topology: tpu7x:2x2x1
jax: 0.10.0
libtpu: 0.0.40
codegen_flags: <defaults>
</compile_context>

<pallas_src>
from functools import partial

import jax
import jax.numpy as jnp
from jax import lax
from jax.experimental import pallas as pl
from jax.experimental.pallas import tpu as pltpu

BN_EPS = 1e-5
IMAGENET_MEAN = (0.485, 0.456, 0.406)
IMAGENET_STD = (0.229, 0.224, 0.225)
# (out_channels, num_blocks, first_stride) per ResNet-34 stage.
RESNET34_STAGES = ((64, 3, 1), (128, 4, 2), (256, 6, 2), (512, 3, 2))

VMEM_LIMIT_BYTES = 48 * 1024 * 1024  # explicit budget: fits v7x's 64 MiB VMEM with headroom


def _round_up(x, m):
    return (x + m - 1) // m * m


# ----------------------------- Pallas kernels ---------------------------------------------------

def _normalize_kernel(x_ref, s_ref, b_ref, o_ref):
    # (x - mean) / std  ==  x * (1/std) + (-mean/std)
    o_ref[...] = x_ref[...] * s_ref[...] + b_ref[...]


def _make_conv_kernel(relu, has_residual):
    """Fused (patches @ W) * bn_scale + bn_shift (+ residual) (+ ReLU)."""
    if has_residual:
        def kernel(p_ref, w_ref, sb_ref, r_ref, o_ref):
            y = jnp.dot(p_ref[...], w_ref[...], preferred_element_type=jnp.float32)
            y = y * sb_ref[0:1, :] + sb_ref[1:2, :] + r_ref[...]
            if relu:
                y = jnp.maximum(y, 0.0)
            o_ref[...] = y.astype(o_ref.dtype)
    else:
        def kernel(p_ref, w_ref, sb_ref, o_ref):
            y = jnp.dot(p_ref[...], w_ref[...], preferred_element_type=jnp.float32)
            y = y * sb_ref[0:1, :] + sb_ref[1:2, :]
            if relu:
                y = jnp.maximum(y, 0.0)
            o_ref[...] = y.astype(o_ref.dtype)
    return kernel


def _make_max_kernel(taps):
    def kernel(x_ref, o_ref):  # x: (R, taps, C) -> max over taps
        x = x_ref[...]
        m = x[:, 0, :]
        for t in range(1, taps):
            m = jnp.maximum(m, x[:, t, :])
        o_ref[...] = m
    return kernel


def _make_pool_sum_kernel(groups, inv_spatial):
    def kernel(x_ref, o_ref):  # x: (B, groups, C) -> (sum over groups) * (1 / (h*w))
        x = x_ref[...]
        acc = x[:, 0, :]
        for g in range(1, groups):
            acc = acc + x[:, g, :]
        o_ref[...] = acc * inv_spatial
    return kernel


# ----------------------------- Pallas wrappers ---------------------------------------------------

@jax.jit
def normalize_imagenet_pallas(x):
    """x: (B, 3, H, W) f32 -> ImageNet-normalized, same shape."""
    B, C, H, W = x.shape
    hw = H * W
    std = jnp.array(IMAGENET_STD, jnp.float32)
    mean = jnp.array(IMAGENET_MEAN, jnp.float32)
    scale = jnp.broadcast_to((1.0 / std).reshape(1, C, 1), (1, C, hw))
    shift = jnp.broadcast_to((-mean / std).reshape(1, C, 1), (1, C, hw))
    out = pl.pallas_call(
        _normalize_kernel,
        out_shape=jax.ShapeDtypeStruct((B, C, hw), jnp.float32),
        grid=(B,),
        in_specs=[pl.BlockSpec((1, C, hw), lambda i: (i, 0, 0)),
                  pl.BlockSpec((1, C, hw), lambda i: (0, 0, 0)),
                  pl.BlockSpec((1, C, hw), lambda i: (0, 0, 0))],
        out_specs=pl.BlockSpec((1, C, hw), lambda i: (i, 0, 0)),
        compiler_params=pltpu.CompilerParams(dimension_semantics=("parallel",)),
    )(x.reshape(B, C, hw), scale, shift)
    return out.reshape(B, C, H, W)


def _extract_patches(x, k, stride, padding, pad_value=0.0):
    """x: (B, H, W, C) -> (B, Ho, Wo, C, k*k) cross-correlation taps (PyTorch conv ordering)."""
    B, H, W, C = x.shape
    xp = jnp.pad(x, ((0, 0), (padding, padding), (padding, padding), (0, 0)),
                 constant_values=pad_value)
    Hp, Wp = H + 2 * padding, W + 2 * padding
    Ho = (Hp - k) // stride + 1
    Wo = (Wp - k) // stride + 1
    taps = []
    for i in range(k):
        for j in range(k):
            taps.append(xp[:, i:i + stride * (Ho - 1) + 1:stride,
                           j:j + stride * (Wo - 1) + 1:stride, :])
    return jnp.stack(taps, axis=-1), Ho, Wo


def _conv_bn_pallas_impl(x, wmat, ss, residual, *, ksize, stride, padding, relu):
    """x: (B,H,W,Cin) f32; wmat: (Cin*k*k, Cout) f32; ss: (2, Cout) fused BN scale/shift."""
    B, H, W, Cin = x.shape
    Cout = wmat.shape[1]
    pat, Ho, Wo = _extract_patches(x, ksize, stride, padding)
    R, K = B * Ho * Wo, Cin * ksize * ksize
    patches = pat.reshape(R, K)

    # MXU / lane friendly padding: K and Cout to multiples of 128 (lane-dense output),
    # rows to a multiple of the row tile.  Row tile kept large so the BlockSpec pipeline
    # overlaps DMA with compute; weights and BN params stay resident across the grid.
    K_pad = _round_up(K, 128)
    N_pad = _round_up(Cout, 128)
    TR = 512 if R >= 512 else (256 if R >= 256 else _round_up(max(R, 8), 8))
    R_pad = _round_up(R, TR)

    p = jnp.pad(patches.astype(jnp.bfloat16), ((0, R_pad - R), (0, K_pad - K)))
    w = jnp.pad(wmat.astype(jnp.bfloat16), ((0, K_pad - K), (0, N_pad - Cout)))
    s = jnp.pad(ss, ((0, 0), (0, N_pad - Cout)))

    args = [p, w, s]
    in_specs = [pl.BlockSpec((TR, K_pad), lambda i: (i, 0)),      # streamed row tiles
                pl.BlockSpec((K_pad, N_pad), lambda i: (0, 0)),   # resident weights
                pl.BlockSpec((2, N_pad), lambda i: (0, 0))]       # resident fused BN params
    if residual is not None:
        r = jnp.pad(residual.reshape(R, Cout), ((0, R_pad - R), (0, N_pad - Cout)))
        args.append(r)
        in_specs.append(pl.BlockSpec((TR, N_pad), lambda i: (i, 0)))

    out = pl.pallas_call(
        _make_conv_kernel(relu, residual is not None),
        out_shape=jax.ShapeDtypeStruct((R_pad, N_pad), jnp.float32),
        grid=(R_pad // TR,),
        in_specs=in_specs,
        out_specs=pl.BlockSpec((TR, N_pad), lambda i: (i, 0)),
        compiler_params=pltpu.CompilerParams(
            dimension_semantics=("parallel",),          # row tiles shard across TensorCores
            vmem_limit_bytes=VMEM_LIMIT_BYTES),
    )(*args)
    return out[:R, :Cout].reshape(B, Ho, Wo, Cout)


@partial(jax.jit, static_argnames=("ksize", "stride", "padding", "relu"))
def _conv_bn_pallas(x, wmat, ss, *, ksize, stride, padding, relu):
    return _conv_bn_pallas_impl(x, wmat, ss, None, ksize=ksize, stride=stride,
                                padding=padding, relu=relu)


@partial(jax.jit, static_argnames=("ksize", "stride", "padding", "relu"))
def _conv_bn_res_pallas(x, wmat, ss, residual, *, ksize, stride, padding, relu):
    return _conv_bn_pallas_impl(x, wmat, ss, residual, ksize=ksize, stride=stride,
                                padding=padding, relu=relu)


@jax.jit
def maxpool_3x3_s2_pallas(x):
    """x: (B, H, W, C) post-ReLU -> 3x3 stride-2 pad-1 max pool (Pallas max over 9 taps)."""
    B, H, W, C = x.shape
    pat, Ho, Wo = _extract_patches(x, 3, 2, 1, pad_value=-1e30)
    R = B * Ho * Wo
    taps = jnp.swapaxes(pat, -1, -2).reshape(R, 9, C)
    out = pl.pallas_call(
        _make_max_kernel(9),
        out_shape=jax.ShapeDtypeStruct((R, C), jnp.float32),
        in_specs=[pl.BlockSpec((R, 9, C), lambda: (0, 0, 0))],
        out_specs=pl.BlockSpec((R, C), lambda: (0, 0)),
    )(taps)
    return out.reshape(B, Ho, Wo, C)


@partial(jax.jit, static_argnames=("n_inputs",))
def avgpool_and_sum_pallas(feats, *, n_inputs):
    """feats: (n_inputs*B, h, w, C) -> (B, C): spatial mean per image, summed over input list."""
    NB, h, w, C = feats.shape
    B = NB // n_inputs
    G = n_inputs * h * w
    x = feats.reshape(n_inputs, B, h * w, C)
    x = jnp.transpose(x, (1, 0, 2, 3)).reshape(B, G, C)
    return pl.pallas_call(
        _make_pool_sum_kernel(G, 1.0 / (h * w)),
        out_shape=jax.ShapeDtypeStruct((B, C), jnp.float32),
        in_specs=[pl.BlockSpec((B, G, C), lambda: (0, 0, 0))],
        out_specs=pl.BlockSpec((B, C), lambda: (0, 0)),
    )(x)


# ----------------------------- Parameters (ResNet-34, BN folded) ---------------------------------

def _conv_bn_init(key, cin, cout, k):
    kw_, kg, kb, km, kv = jax.random.split(key, 5)
    fan_in = cin * k * k
    w = jax.random.normal(kw_, (cout, cin, k, k), jnp.float32) * (2.0 / fan_in) ** 0.5
    gamma = 1.0 + 0.1 * jax.random.normal(kg, (cout,), jnp.float32)
    beta = 0.1 * jax.random.normal(kb, (cout,), jnp.float32)
    mean = 0.1 * jax.random.normal(km, (cout,), jnp.float32)
    var = jnp.abs(1.0 + 0.1 * jax.random.normal(kv, (cout,), jnp.float32))
    scale = gamma * lax.rsqrt(var + BN_EPS)     # folded inference BatchNorm
    shift = beta - mean * scale
    return {"w": w,                                   # (Cout, Cin, k, k) for the reference
            "wmat": w.reshape(cout, -1).T,            # (Cin*k*k, Cout)   for the Pallas matmul
            "scale": scale, "shift": shift,
            "ss": jnp.stack([scale, shift], axis=0),  # fused (2, Cout) BN params (one DMA)
            "ksize": k}


def init_image_cnn_params(key):
    key, kstem = jax.random.split(key)
    stem = _conv_bn_init(kstem, 3, 64, 7)
    stages, cin = [], 64
    for cout, nblocks, first_stride in RESNET34_STAGES:
        blocks = []
        for b in range(nblocks):
            stride = first_stride if b == 0 else 1
            key, k1, k2, k3 = jax.random.split(key, 4)
            blocks.append({
                "stride": stride,
                "conv1": _conv_bn_init(k1, cin, cout, 3),
                "conv2": _conv_bn_init(k2, cout, cout, 3),
                "down": (_conv_bn_init(k3, cin, cout, 1)
                         if (stride != 1 or cin != cout) else None)})
            cin = cout
        stages.append(blocks)
    return {"stem": stem, "stages": stages}


# ----------------------------- Forward passes ----------------------------------------------------

def _apply_conv_pallas(x, cp, *, stride, padding, relu, residual=None):
    if residual is None:
        return _conv_bn_pallas(x, cp["wmat"], cp["ss"], ksize=cp["ksize"],
                               stride=stride, padding=padding, relu=relu)
    return _conv_bn_res_pallas(x, cp["wmat"], cp["ss"], residual, ksize=cp["ksize"],
                               stride=stride, padding=padding, relu=relu)


def image_cnn_forward(inputs, params):
    """Pallas forward of ImageCNN: sum_i resnet_features(normalize(inputs[i])) -> (B, 512)."""
    x = jnp.concatenate(list(inputs), axis=0)               # stack the list along batch
    x = normalize_imagenet_pallas(x)                        # Pallas (NCHW, lane = H*W)
    x = jnp.transpose(x, (0, 2, 3, 1))                      # NHWC (channel-last for matmuls)
    x = _apply_conv_pallas(x, params["stem"], stride=2, padding=3, relu=True)
    x = maxpool_3x3_s2_pallas(x)
    for blocks in params["stages"]:
        for blk in blocks:
            identity = x
            out = _apply_conv_pallas(x, blk["conv1"], stride=blk["stride"], padding=1, relu=True)
            if blk["down"] is not None:
                identity = _apply_conv_pallas(x, blk["down"], stride=blk["stride"],
                                              padding=0, relu=False)
            x = _apply_conv_pallas(out, blk["conv2"], stride=1, padding=1, relu=True,
                                   residual=identity)
    return avgpool_and_sum_pallas(x, n_inputs=len(inputs))


def _conv_bn_ref(x, cp, *, stride, padding, relu, residual=None):
    w_hwio = jnp.transpose(cp["w"], (2, 3, 1, 0)).astype(jnp.bfloat16)
    y = lax.conv_general_dilated(
        x.astype(jnp.bfloat16), w_hwio,
        window_strides=(stride, stride),
        padding=((padding, padding), (padding, padding)),
        dimension_numbers=("NHWC", "HWIO", "NHWC"),
        preferred_element_type=jnp.float32)
    y = y * cp["scale"].reshape(1, 1, 1, -1) + cp["shift"].reshape(1, 1, 1, -1)
    if residual is not None:
        y = y + residual
    if relu:
        y = jnp.maximum(y, 0.0)
    return y


def reference_forward(inputs, params):
    """Pure-JAX (lax.conv) reference with the same bf16-operand / f32-accumulate recipe."""
    x = jnp.concatenate(list(inputs), axis=0)
    mean = jnp.array(IMAGENET_MEAN, jnp.float32).reshape(1, 3, 1, 1)
    std = jnp.array(IMAGENET_STD, jnp.float32).reshape(1, 3, 1, 1)
    x = (x - mean) / std
    x = jnp.transpose(x, (0, 2, 3, 1))
    x = _conv_bn_ref(x, params["stem"], stride=2, padding=3, relu=True)
    x = lax.reduce_window(x, -jnp.inf, lax.max, (1, 3, 3, 1), (1, 2, 2, 1),
                          ((0, 0), (1, 1), (1, 1), (0, 0)))
    for blocks in params["stages"]:
        for blk in blocks:
            identity = x
            out = _conv_bn_ref(x, blk["conv1"], stride=blk["stride"], padding=1, relu=True)
            if blk["down"] is not None:
                identity = _conv_bn_ref(x, blk["down"], stride=blk["stride"],
                                        padding=0, relu=False)
            x = _conv_bn_ref(out, blk["conv2"], stride=1, padding=1, relu=True,
                             residual=identity)
    n, B = len(inputs), inputs[0].shape[0]
    feats = x.mean(axis=(1, 2))                 # global average pool -> (n*B, 512)
    return feats.reshape(n, B, -1).sum(axis=0)  # sum over the input list -> (B, 512)


if __name__ == "__main__":
    root = jax.random.PRNGKey(0)
    kparam, kx1, kx2 = jax.random.split(root, 3)
    params = init_image_cnn_params(kparam)

    # ImageCNN consumes a *list* of image batches: two views of (batch=2, 3, 16, 16).
    B, C, H, W = 2, 3, 16, 16
    inputs = [jax.random.uniform(kx1, (B, C, H, W), dtype=jnp.float32),
              jax.random.uniform(kx2, (B, C, H, W), dtype=jnp.float32)]

    out = jax.block_until_ready(image_cnn_forward(inputs, params))
    assert out.shape == (B, 512), out.shape

    ref = jax.block_until_ready(reference_forward(inputs, params))
    max_err = float(jnp.max(jnp.abs(out - ref)))
    assert jnp.allclose(out, ref, atol=5e-2, rtol=5e-2), f"mismatch vs reference, max|diff|={max_err}"

    print("KERNEL_OK")
</pallas_src>

<mosaic_0001>
module attributes {stable_mosaic.version = 11 : i64} {
  func.func @_normalize_kernel(%arg0: i32, %arg1: memref<1x3x256xf32, #tpu.memory_space<vmem>>, %arg2: memref<1x3x256xf32, #tpu.memory_space<vmem>>, %arg3: memref<1x3x256xf32, #tpu.memory_space<vmem>>, %arg4: memref<1x3x256xf32, #tpu.memory_space<vmem>>) attributes {dimension_semantics = [#tpu.dimension_semantics<parallel>], iteration_bounds = array<i64: 4>, scalar_prefetch = 0 : i64, scratch_operands = 0 : i64, tpu.core_type = #tpu.core_type<tc>, window_params = [{transform_indices = @transform_0, window_bounds = array<i64: 1, 3, 256>}, {pipeline_mode = #tpu.pipeline_mode<synchronous>, transform_indices = @transform_1, window_bounds = array<i64: 1, 3, 256>}, {pipeline_mode = #tpu.pipeline_mode<synchronous>, transform_indices = @transform_2, window_bounds = array<i64: 1, 3, 256>}, {transform_indices = @transform_3, window_bounds = array<i64: 1, 3, 256>}]} {
    %c0 = arith.constant 0 : index
    %c0_0 = arith.constant 0 : index
    %c0_1 = arith.constant 0 : index
    %0 = vector.load %arg1[%c0, %c0_0, %c0_1] : memref<1x3x256xf32, #tpu.memory_space<vmem>>, vector<1x3x256xf32>
    %c0_2 = arith.constant 0 : index
    %c0_3 = arith.constant 0 : index
    %c0_4 = arith.constant 0 : index
    %1 = vector.load %arg2[%c0_2, %c0_3, %c0_4] : memref<1x3x256xf32, #tpu.memory_space<vmem>>, vector<1x3x256xf32>
    %2 = arith.mulf %0, %1 : vector<1x3x256xf32>
    %c0_5 = arith.constant 0 : index
    %c0_6 = arith.constant 0 : index
    %c0_7 = arith.constant 0 : index
    %3 = vector.load %arg3[%c0_5, %c0_6, %c0_7] : memref<1x3x256xf32, #tpu.memory_space<vmem>>, vector<1x3x256xf32>
    %4 = arith.addf %2, %3 : vector<1x3x256xf32>
    %c0_8 = arith.constant 0 : index
    %c0_9 = arith.constant 0 : index
    %c0_10 = arith.constant 0 : index
    %5 = vector.load %arg4[%c0_8, %c0_9, %c0_10] : memref<1x3x256xf32, #tpu.memory_space<vmem>>, vector<1x3x256xf32>
    tpu.vector_store %arg4[%c0_8, %c0_9, %c0_10], %4 {strides = array<i32>} : memref<1x3x256xf32, #tpu.memory_space<vmem>>, vector<1x3x256xf32>,
    return
  }
  func.func @transform_0(%arg0: i32) -> (i32, i32, i32) {
    %c0_i32 = arith.constant 0 : i32
    %c0_i32_0 = arith.constant 0 : i32
    %c0_i32_1 = arith.constant 0 : i32
    return %arg0, %c0_i32, %c0_i32_0 : i32, i32, i32
  }
  func.func @transform_1(%arg0: i32) -> (i32, i32, i32) {
    %c0_i32 = arith.constant 0 : i32
    %c0_i32_0 = arith.constant 0 : i32
    %c0_i32_1 = arith.constant 0 : i32
    %c0_i32_2 = arith.constant 0 : i32
    return %c0_i32, %c0_i32_0, %c0_i32_1 : i32, i32, i32
  }
  func.func @transform_2(%arg0: i32) -> (i32, i32, i32) {
    %c0_i32 = arith.constant 0 : i32
    %c0_i32_0 = arith.constant 0 : i32
    %c0_i32_1 = arith.constant 0 : i32
    %c0_i32_2 = arith.constant 0 : i32
    return %c0_i32, %c0_i32_0, %c0_i32_1 : i32, i32, i32
  }
  func.func @transform_3(%arg0: i32) -> (i32, i32, i32) {
    %c0_i32 = arith.constant 0 : i32
    %c0_i32_0 = arith.constant 0 : i32
    %c0_i32_1 = arith.constant 0 : i32
    return %arg0, %c0_i32, %c0_i32_0 : i32, i32, i32
  }
}

</mosaic_0001>

<llo_original>
// kernel: normalize_imagenet_pallas.1
$region0: #{normalize_imagenet_pallas.1}
  #allocation0 [shape = 'u32[]', space=smem, size = 0x4, offset = 0x4, fixed_abs, tag = 'smem constant byte address 0x4 - core index']
  #allocation1 [shape = 'u32[144,128]{1,0:T(1,128)}', space=vmem, size = 0x12000, scoped, tag = 'internal scratch']
  %s0 = inlined_call_operand.vmem [shape: f32[4,3,256], index: 0, kind: input, shape index: {}]
  %s1 = inlined_call_operand.vmem [shape: f32[1,3,256], index: 1, kind: input, shape index: {}]
  %s2 = inlined_call_operand.vmem [shape: f32[1,3,256], index: 2, kind: input, shape index: {}]
  %s3 = inlined_call_operand.vmem [shape: f32[4,3,256], index: 3, kind: output, shape index: {}]
  %s4 = sld [smem:[#allocation0]]
  $region45: #{normalize_imagenet_pallas.1} parent=0
    _
  %s6 = ssub.s32 1, %s4
  %s7 = scalar_select 0, %s6, %s4
  loop: start=0, step=1, limit=6
  $region2: #{normalize_imagenet_pallas.1} parent=0 // loop_pre_header
    _
  $region3: #{normalize_imagenet_pallas.1} parent=0 // loop_header
    %s9 = sphi 0, %s13
    %p10 = scmp.ge.s32.totalorder %s9, 6
    %s19 = sphi 0, %s21
    %s22 = sphi 0, %s19
    %s23 = sphi 0, %s22
    %s39 = sphi 0, %s23
    %s43 = sphi 0, %s43
    %s45 = sphi 0, %s43
    %s46 = sphi 0, %s45
    %s60 = sphi 0, %s46
    %s64 = sphi 0, %s64
    %s66 = sphi 0, %s64
    %s67 = sphi 0, %s66
    %s81 = sphi 0, %s67
    %s87 = sphi 0, %s89
    %s90 = sphi 0, %s87
    %s91 = sphi 0, %s90
    %s107 = sphi 0, %s91
  $region4: #{normalize_imagenet_pallas.1} parent=0 // loop_header_branch
    %12 = sbr.rel (%p10) target = $region8
  $region5: #{normalize_imagenet_pallas.1} parent=0 // loop_body
    %s14 = ssub.s32 %s9, 1
    %s15 = ssub.s32 %s9, 2
    %s16 = sadd.s32 %s9, 1
    %s17 = ssub.s32 %s9, %s16
    %p18 = scmp.eq.s32.totalorder %s17, 0
    %s20 = sadd.s32 %s19, 1
    %s21 = scalar_select %p18, %s19, %s20
    %p24 = pneg %p18
    %p25 = scmp.eq.s32.totalorder %s9, 3
    %p26 = por %p24, %p25
    %p27 = scmp.ne.s32.totalorder %s19, %s22
    %p28 = scmp.eq.s32.totalorder %s9, 0
    %p29 = por %p27, %p28
    %p30 = scmp.ne.s32.totalorder %s19, %s22
    %p31 = scmp.eq.s32.totalorder %s14, 3
    %p32 = por %p30, %p31
    %p33 = scmp.ne.s32.totalorder %s22, %s23
    %p34 = scmp.eq.s32.totalorder %s14, 0
    %p35 = por %p33, %p34
    %p36 = scmp.ne.s32.totalorder %s22, %s23
    %p37 = scmp.eq.s32.totalorder %s15, 3
    %p38 = por %p36, %p37
    %p40 = scmp.ne.s32.totalorder %s23, %s39
    %p41 = scmp.eq.s32.totalorder %s15, 0
    %p42 = por %p40, %p41
    %s44 = sadd.s32 %s43, 1
    %p47 = scmp.eq.s32.totalorder %s9, 3
    %p48 = scmp.ne.s32.totalorder %s43, %s45
    %p49 = scmp.eq.s32.totalorder %s9, 0
    %p50 = por %p48, %p49
    %p51 = scmp.ne.s32.totalorder %s43, %s45
    %p52 = scmp.eq.s32.totalorder %s14, 3
    %p53 = por %p51, %p52
    %p54 = scmp.ne.s32.totalorder %s45, %s46
    %p55 = scmp.eq.s32.totalorder %s14, 0
    %p56 = por %p54, %p55
    %p57 = scmp.ne.s32.totalorder %s45, %s46
    %p58 = scmp.eq.s32.totalorder %s15, 3
    %p59 = por %p57, %p58
    %p61 = scmp.ne.s32.totalorder %s46, %s60
    %p62 = scmp.eq.s32.totalorder %s15, 0
    %p63 = por %p61, %p62
    %s65 = sadd.s32 %s64, 1
    %p68 = scmp.eq.s32.totalorder %s9, 3
    %p69 = scmp.ne.s32.totalorder %s64, %s66
    %p70 = scmp.eq.s32.totalorder %s9, 0
    %p71 = por %p69, %p70
    %p72 = scmp.ne.s32.totalorder %s64, %s66
    %p73 = scmp.eq.s32.totalorder %s14, 3
    %p74 = por %p72, %p73
    %p75 = scmp.ne.s32.totalorder %s66, %s67
    %p76 = scmp.eq.s32.totalorder %s14, 0
    %p77 = por %p75, %p76
    %p78 = scmp.ne.s32.totalorder %s66, %s67
    %p79 = scmp.eq.s32.totalorder %s15, 3
    %p80 = por %p78, %p79
    %p82 = scmp.ne.s32.totalorder %s67, %s81
    %p83 = scmp.eq.s32.totalorder %s15, 0
    %p84 = por %p82, %p83
    %s85 = ssub.s32 %s9, %s16
    %p86 = scmp.eq.s32.totalorder %s85, 0
    %s88 = sadd.s32 %s87, 1
    %s89 = scalar_select %p86, %s87, %s88
    %p92 = pneg %p86
    %p93 = scmp.eq.s32.totalorder %s9, 3
    %p94 = por %p92, %p93
    %p95 = scmp.ne.s32.totalorder %s87, %s90
    %p96 = scmp.eq.s32.totalorder %s9, 0
    %p97 = por %p95, %p96
    %p98 = scmp.ne.s32.totalorder %s87, %s90
    %p99 = scmp.eq.s32.totalorder %s14, 3
    %p100 = por %p98, %p99
    %p101 = scmp.ne.s32.totalorder %s90, %s91
    %p102 = scmp.eq.s32.totalorder %s14, 0
    %p103 = por %p101, %p102
    %p104 = scmp.ne.s32.totalorder %s90, %s91
    %p105 = scmp.eq.s32.totalorder %s15, 3
    %p106 = por %p104, %p105
    %p108 = scmp.ne.s32.totalorder %s91, %s107
    %p109 = scmp.eq.s32.totalorder %s15, 0
    %p110 = por %p108, %p109
    %p111 = scmp.le.s32.totalorder 1, %s9
    %p112 = scmp.lt.s32.totalorder %s9, 5
    %p113 = pnand %p111, %p112
    %p114 = pneg %p113
    // Predicated region
    $region9: #{normalize_imagenet_pallas.1} parent=5 // pred_check
      _
    $region10: #{normalize_imagenet_pallas.1} parent=5 // pred_check_branch
      %116 = sbr.rel (%p113) target = $region12
    $region11: #{normalize_imagenet_pallas.1} parent=5 // pred_region
      %s117 = ssub.s32 %s9, 1
      // Predicated region
      $region13: #{normalize_imagenet_pallas.1} parent=11 // pred_check
        %p118 = pneg %p56
      $region14: #{normalize_imagenet_pallas.1} parent=11 // pred_check_branch
        %120 = sbr.rel (%p118) target = $region16
      $region15: #{normalize_imagenet_pallas.1} parent=11 // pred_region
        _
      $region16: #{normalize_imagenet_pallas.1} parent=11 // pred_fallthru
        _
      // Predicated region
      $region17: #{normalize_imagenet_pallas.1} parent=11 // pred_check
        %p121 = pneg %p77
      $region18: #{normalize_imagenet_pallas.1} parent=11 // pred_check_branch
        %123 = sbr.rel (%p121) target = $region20
      $region19: #{normalize_imagenet_pallas.1} parent=11 // pred_region
        _
      $region20: #{normalize_imagenet_pallas.1} parent=11 // pred_fallthru
        _
    $region12: #{normalize_imagenet_pallas.1} parent=5 // pred_fallthru
      _
    %p124 = scmp.lt.s32.totalorder %s9, 4
    // Predicated region
    $region21: #{normalize_imagenet_pallas.1} parent=5 // pred_check
      %p125 = pneg %p124
    $region22: #{normalize_imagenet_pallas.1} parent=5 // pred_check_branch
      %127 = sbr.rel (%p125) target = $region24
    $region23: #{normalize_imagenet_pallas.1} parent=5 // pred_region
      // Predicated region
      $region25: #{normalize_imagenet_pallas.1} parent=23 // pred_check
        %p128 = pneg %p29
      $region26: #{normalize_imagenet_pallas.1} parent=23 // pred_check_branch
        %130 = sbr.rel (%p128) target = $region28
      $region27: #{normalize_imagenet_pallas.1} parent=23 // pred_region
        %p131 = scmp.lt.s32.totalorder %s9, 3
        %s132 = scalar_select %p131, %s9, 3
        %s133 = smul.addr %s132, 2
        %s134 = smul.addr %s133, 4
        %s135 = scalar_lea.vmem %s0, %s134
      $region28: #{normalize_imagenet_pallas.1} parent=23 // pred_fallthru
        _
    $region24: #{normalize_imagenet_pallas.1} parent=5 // pred_fallthru
      _
    %p136 = scmp.le.s32.totalorder 1, %s9
    %p137 = scmp.lt.s32.totalorder %s9, 5
    %p138 = pnand %p136, %p137
    %p139 = pneg %p138
    // Predicated region
    $region29: #{normalize_imagenet_pallas.1} parent=5 // pred_check
      _
    $region30: #{normalize_imagenet_pallas.1} parent=5 // pred_check_branch
      %141 = sbr.rel (%p138) target = $region32
    $region31: #{normalize_imagenet_pallas.1} parent=5 // pred_region
      %s142 = ssub.s32 %s9, 1
      %p143 = scmp.lt.s32.totalorder %s14, 3
      %s144 = scalar_select %p143, %s14, 3
      %s145 = smul.addr %s144, 2
      %s146 = smul.addr %s145, 4
      %s147 = scalar_lea.vmem %s0, %s146
      %p148 = pneg %p35
      %p149 = pneg %p32
      %p150 = pneg %p56
      %p151 = pneg %p53
      %p152 = pneg %p77
      %p153 = pneg %p74
      %p154 = pneg %p103
      %p155 = pneg %p100
      %p156 = scmp.lt.s32.totalorder %s14, 3
      %s157 = scalar_select %p156, %s14, 3
      %s158 = smul.addr %s157, 2
      %s159 = smul.addr %s158, 4
      %s160 = scalar_lea.vmem %s3, %s159
      %p161 = scmp.lt.s32.totalorder %s14, 3
      %s162 = scalar_select %p161, %s14, 3
      %s163 = smul.addr %s162, 2
      %s164 = smul.addr %s163, 4
      %s165 = scalar_lea.vmem %s0, %s164
      %p166 = scmp.lt.s32.totalorder %s14, 3
      %s167 = scalar_select %p166, %s14, 3
      %s168 = smul.addr %s167, 2
      %s169 = smul.addr %s168, 4
      %s170 = scalar_lea.vmem %s3, %s169
      %v171 = vld [vmem:[%s165] sm:$0x77]
      %v172 = vld [vmem:[%s1] sm:$0x77]
      %v173 = vmul.f32 %v171, %v172
      %v174 = vld [vmem:[%s2] sm:$0x77]
      %v175 = vadd.f32 %v173, %v174
      %176 = vst [vmem:[%s170] sm:$0x77] %v175
      %p177 = scmp.lt.s32.totalorder %s14, 3
      %s178 = scalar_select %p177, %s14, 3
      %s179 = smul.addr %s178, 2
      %s180 = smul.addr %s179, 4
      %s181 = scalar_lea.vmem %s3, %s180
      // Predicated region
      $region33: #{normalize_imagenet_pallas.1} parent=31 // pred_check
        %p182 = pneg %p100
      $region34: #{normalize_imagenet_pallas.1} parent=31 // pred_check_branch
        %184 = sbr.rel (%p182) target = $region36
      $region35: #{normalize_imagenet_pallas.1} parent=31 // pred_region
        _
      $region36: #{normalize_imagenet_pallas.1} parent=31 // pred_fallthru
        _
    $region32: #{normalize_imagenet_pallas.1} parent=5 // pred_fallthru
      _
    %p185 = scmp.le.s32.totalorder 2, %s9
    // Predicated region
    $region37: #{normalize_imagenet_pallas.1} parent=5 // pred_check
      %p186 = pneg %p185
    $region38: #{normalize_imagenet_pallas.1} parent=5 // pred_check_branch
      %188 = sbr.rel (%p186) target = $region40
    $region39: #{normalize_imagenet_pallas.1} parent=5 // pred_region
      %s189 = ssub.s32 %s9, 2
      // Predicated region
      $region41: #{normalize_imagenet_pallas.1} parent=39 // pred_check
        %p190 = pneg %p106
      $region42: #{normalize_imagenet_pallas.1} parent=39 // pred_check_branch
        %192 = sbr.rel (%p190) target = $region44
      $region43: #{normalize_imagenet_pallas.1} parent=39 // pred_region
        %p193 = scmp.lt.s32.totalorder %s15, 3
        %s194 = scalar_select %p193, %s15, 3
        %s195 = smul.addr %s194, 2
        %s196 = smul.addr %s195, 4
        %s197 = scalar_lea.vmem %s3, %s196
      $region44: #{normalize_imagenet_pallas.1} parent=39 // pred_fallthru
        _
    $region40: #{normalize_imagenet_pallas.1} parent=5 // pred_fallthru
      _
  $region6: #{normalize_imagenet_pallas.1} parent=0 // loop_footer
    %s13 = sadd.s32 1, %s9
  $region7: #{normalize_imagenet_pallas.1} parent=0 // loop_footer_branch
    %8 = sbr.rel target = $region3
  $region8: #{normalize_imagenet_pallas.1} parent=0 // loop_exit
    _

</llo_original>
